<compile_context>
chip_gen: v6e
topology: v6e:2x2x1
jax: 0.10.0
libtpu: 0.0.40
codegen_flags: <defaults>
</compile_context>

<pallas_src>
import functools

import jax
import jax.numpy as jnp
from jax import lax
from jax.experimental import pallas as pl
from jax.experimental.pallas import tpu as pltpu


@functools.lru_cache(maxsize=None)
def _roll_is_jnp_convention() -> bool:
    """Probe pltpu.roll's rotation direction once (True if it matches
    jnp.roll, i.e. positive shift moves data toward higher indices)."""
    def probe(x_ref, o_ref):
        o_ref[...] = pltpu.roll(x_ref[...], 1, axis=1)

    with jax.ensure_compile_time_eval():
        x = jnp.arange(8 * 128, dtype=jnp.float32).reshape(8, 128)
        out = pl.pallas_call(
            probe, out_shape=jax.ShapeDtypeStruct((8, 128), jnp.float32))(x)
        return bool(out[0, 1] == 0.0)   # jnp.roll(x, 1): out[i] == x[i - 1]


def _partial_kernel(col_ref, row_ref, x1_ref, x2_ref, o_ref, *,
                    H, W, BC, s_left, s_right, s_up, s_down, use_sq_grads):
    """Partial sum of squared gradient differences over one (TBC, L) block."""
    tbc, _ = x1_ref.shape

    col = col_ref[...]                 # (1, L) int32; -1 marks lane padding
    row = row_ref[...]
    lane_valid = col >= 0
    first_col = col == 0
    last_col = col == (W - 1)
    first_row = row == 0
    last_row = row == (H - 1)

    # Rows of this block that are real (B*C) slices; the last grid block may
    # run past B*C and its extra rows hold unspecified data.
    sub = lax.broadcasted_iota(jnp.int32, (tbc, 1), 0)
    row_valid = (pl.program_id(0) * tbc + sub) < BC
    valid = jnp.logical_and(lane_valid, row_valid)

    def grads(x):
        # kornia 'diff' normalized kernel: central difference with replicate
        # padding, scaled by 0.5.  Neighbours come from XLU rolls on the
        # lane-packed axis; seams (image borders / row wrap-around) are
        # snapped back to the replicate value with VPU selects.
        if W > 1:
            xl = jnp.where(first_col, x, pltpu.roll(x, s_left, axis=1))
            xr = jnp.where(last_col, x, pltpu.roll(x, s_right, axis=1))
            dx = 0.5 * (xr - xl)
        else:
            dx = jnp.zeros_like(x)
        if H > 1:
            xu = jnp.where(first_row, x, pltpu.roll(x, s_up, axis=1))
            xd = jnp.where(last_row, x, pltpu.roll(x, s_down, axis=1))
            dy = 0.5 * (xd - xu)
        else:
            dy = jnp.zeros_like(x)
        return dx, dy

    if use_sq_grads:
        dx1, dy1 = grads(x1_ref[...])
        dx2, dy2 = grads(x2_ref[...])
        # Upcast only at the square-and-accumulate step (bf16 stays bf16 above;
        # for f32 inputs the casts are no-ops).
        dx1 = dx1.astype(jnp.float32)
        dy1 = dy1.astype(jnp.float32)
        dx2 = dx2.astype(jnp.float32)
        dy2 = dy2.astype(jnp.float32)
        ddx = dx1 * dx1 - dx2 * dx2
        ddy = dy1 * dy1 - dy2 * dy2
    else:
        # Finite differences (incl. replicate seams) are linear:
        # grad(x1) - grad(x2) == grad(x1 - x2)  -> half the shift work.
        ddx, ddy = grads(x1_ref[...] - x2_ref[...])
        ddx = ddx.astype(jnp.float32)
        ddy = ddy.astype(jnp.float32)

    # Single fused reduction; invalid lanes/rows excluded via select (not mul,
    # so garbage NaN/Inf in padded regions cannot leak in).
    contrib = jnp.where(valid, ddx * ddx + ddy * ddy, 0.0)
    o_ref[0, 0, 0] = jnp.sum(contrib)


def _round_tbc(tbc, bc):
    """Round slices-per-block so the (TBC, L) block respects the (8, 128)
    sublane tiling rule: TBC is a multiple of 8 or equals B*C."""
    tbc = max(1, min(int(tbc), bc))
    if tbc >= bc:
        return bc
    tbc = max(8, (tbc // 8) * 8)
    return bc if tbc >= bc else tbc


def _choose_tbc(bc, L, in_itemsize):
    """Pick slices-per-block and the scoped-VMEM request for this generation."""
    try:
        vmem_cap = int(pltpu.get_tpu_info().vmem_capacity_bytes)
    except Exception:
        vmem_cap = 64 * 1024 * 1024        # conservative default (v7x per-TC)
    vmem_limit = min(vmem_cap // 2, 64 * 1024 * 1024)
    # Per-slice working set: 2 inputs x 2 pipeline buffers (input dtype) plus
    # ~10 block-sized f32 temporaries inside the kernel (rolled copies, masked
    # selects, dx/dy, squares, diffs).  Keep it within ~3/4 of the scoped
    # budget so nothing spills (tightest on v7x).
    per_slice = L * (4 * in_itemsize + 10 * 4)
    tbc = max(1, (vmem_limit * 3 // 4) // per_slice)
    if bc >= 2:
        # >=2 blocks whenever possible so the "parallel" grid axis is sharded
        # across both v7x TensorCores (and megacore on v5e/v6e).
        tbc = min(tbc, (bc + 1) // 2)
    return _round_tbc(tbc, bc), vmem_limit


def basic_gradient_comparison_loss(x1, x2, use_sq_grads=True, mode="diff",
                                   block_slices=None):
    """JAX/Pallas equivalent of BasicGradientComparissonLoss.forward."""
    if mode != "diff":
        # TODO(synk): 'sobel' mode of kornia.spatial_gradient not implemented.
        raise NotImplementedError("only mode='diff' is implemented")
    assert x1.shape == x2.shape and x1.ndim == 4
    B, C, H, W = x1.shape
    BC = B * C
    HW = H * W
    count = BC * 2 * HW     # spatial_gradient element count (MSE denominator)

    itemsize = jnp.dtype(x1.dtype).itemsize
    L = max(128, -(-HW // 128) * 128)   # lane-packed row length (mult. of 128)

    # Lane packing: (B, C, H, W) -> (B*C, H*W).  The reshape of contiguous
    # NCHW data is free; only ragged HW needs a wrapper-side pad copy.
    x1f = x1.reshape(BC, HW)
    x2f = x2.reshape(BC, HW)
    if L != HW:
        # TODO(synk): ragged HW costs one extra HBM pass for the pad; a
        # ragged-lane-axis roll in-kernel would avoid it.
        pad = ((0, 0), (0, L - HW))
        x1f = jnp.pad(x1f, pad)
        x2f = jnp.pad(x2f, pad)

    # Per-lane column / row indices of the packed layout (-1 marks lane pad);
    # precomputed here so the kernel only does comparisons (no vector int mod).
    pos = jnp.arange(L, dtype=jnp.int32)
    in_img = pos < HW
    col_idx = jnp.where(in_img, pos % W, -1).reshape(1, L)
    row_idx = jnp.where(in_img, pos // W, -1).reshape(1, L)

    tbc, vmem_limit = _choose_tbc(BC, L, itemsize)
    if block_slices is not None:          # manual override (mainly for tests)
        tbc = _round_tbc(block_slices, BC)
    num_blocks = -(-BC // tbc)

    # Lane-shift amounts that fetch the left/right/up/down neighbour in the
    # packed layout, honoring pltpu.roll's (probed) rotation direction.
    if _roll_is_jnp_convention():
        s_left, s_right = 1, (L - 1) % L          # x[i-1], x[i+1]
        s_up, s_down = W % L, (L - W) % L         # x[i-W], x[i+W]
    else:
        s_left, s_right = (L - 1) % L, 1
        s_up, s_down = (L - W) % L, W % L

    kernel = functools.partial(
        _partial_kernel, H=H, W=W, BC=BC,
        s_left=s_left, s_right=s_right, s_up=s_up, s_down=s_down,
        use_sq_grads=bool(use_sq_grads))

    flops_per_elem = 20 if use_sq_grads else 12
    partials = pl.pallas_call(
        kernel,
        out_shape=jax.ShapeDtypeStruct((num_blocks, 1, 1), jnp.float32),
        grid=(num_blocks,),
        in_specs=[
            pl.BlockSpec((1, L), lambda i: (0, 0)),     # col indices (revisited)
            pl.BlockSpec((1, L), lambda i: (0, 0)),     # row indices (revisited)
            pl.BlockSpec((tbc, L), lambda i: (i, 0)),   # x1 slices
            pl.BlockSpec((tbc, L), lambda i: (i, 0)),   # x2 slices
        ],
        out_specs=pl.BlockSpec((1, 1, 1), lambda i: (i, 0, 0)),
        compiler_params=pltpu.CompilerParams(
            dimension_semantics=("parallel",),   # per-block partials, no carry
            vmem_limit_bytes=vmem_limit,
        ),
        cost_estimate=pl.CostEstimate(
            flops=flops_per_elem * BC * HW,
            transcendentals=0,
            bytes_accessed=2 * BC * L * itemsize,
        ),
    )(col_idx, row_idx, x1f, x2f)

    return jnp.sum(partials) / count


def _reference(x1, x2, use_sq_grads=True):
    """Pure-JAX reference matching kornia spatial_gradient(mode='diff') + MSE."""
    def sg(x):
        xp = jnp.pad(x, ((0, 0), (0, 0), (1, 1), (1, 1)), mode="edge")
        dx = 0.5 * (xp[:, :, 1:-1, 2:] - xp[:, :, 1:-1, :-2])
        dy = 0.5 * (xp[:, :, 2:, 1:-1] - xp[:, :, :-2, 1:-1])
        return jnp.stack([dx, dy], axis=2)  # (B, C, 2, H, W)

    g1, g2 = sg(x1), sg(x2)
    if use_sq_grads:
        g1, g2 = g1 ** 2, g2 ** 2
    return jnp.mean((g1 - g2) ** 2)


if __name__ == "__main__":
    key = jax.random.PRNGKey(0)
    k1, k2, k3, k4 = jax.random.split(key, 4)

    # Case 1: module-default config, small NCHW, lane-aligned HW (16*16=256).
    B, C, H, W = 2, 4, 16, 16
    x1 = jax.random.normal(k1, (B, C, H, W), dtype=jnp.float32)
    x2 = jax.random.normal(k2, (B, C, H, W), dtype=jnp.float32)
    loss = jax.block_until_ready(
        basic_gradient_comparison_loss(x1, x2, use_sq_grads=True, mode="diff"))
    ref = _reference(x1, x2, use_sq_grads=True)
    assert jnp.allclose(loss, ref, rtol=1e-5, atol=1e-6), (loss, ref)

    # Case 2: ragged HW (24*20=480 -> lane-padded to 512), multi-block grid
    # with a ragged last block (15 slices, 8 per block), and the
    # use_sq_grads=False (linear gradient-of-difference) path.
    B2, C2, H2, W2 = 3, 5, 24, 20
    y1 = jax.random.normal(k3, (B2, C2, H2, W2), dtype=jnp.float32)
    y2 = jax.random.normal(k4, (B2, C2, H2, W2), dtype=jnp.float32)
    loss2 = jax.block_until_ready(
        basic_gradient_comparison_loss(y1, y2, use_sq_grads=False, mode="diff",
                                       block_slices=8))
    ref2 = _reference(y1, y2, use_sq_grads=False)
    assert jnp.allclose(loss2, ref2, rtol=1e-5, atol=1e-6), (loss2, ref2)

    print("KERNEL_OK")
</pallas_src>

<mosaic_0001>
module attributes {stable_mosaic.version = 11 : i64} {
  func.func @probe(%arg0: memref<8x128xf32, #tpu.memory_space<vmem>>, %arg1: memref<8x128xf32, #tpu.memory_space<vmem>>) attributes {dimension_semantics = [], scalar_prefetch = 0 : i64, scratch_operands = 0 : i64, tpu.core_type = #tpu.core_type<tc>} {
    %c0 = arith.constant 0 : index
    %c0_0 = arith.constant 0 : index
    %0 = vector.load %arg0[%c0, %c0_0] : memref<8x128xf32, #tpu.memory_space<vmem>>, vector<8x128xf32>
    %c1_i32 = arith.constant 1 : i32
    %1 = tpu.dynamic_rotate %0 by %c1_i32 dim 1 : vector<8x128xf32>, i32 -> vector<8x128xf32>
    %c0_1 = arith.constant 0 : index
    %c0_2 = arith.constant 0 : index
    %2 = vector.load %arg1[%c0_1, %c0_2] : memref<8x128xf32, #tpu.memory_space<vmem>>, vector<8x128xf32>
    tpu.vector_store %arg1[%c0_1, %c0_2], %1 {strides = array<i32>} : memref<8x128xf32, #tpu.memory_space<vmem>>, vector<8x128xf32>,
    return
  }
}

</mosaic_0001>

<llo_original>
// kernel: tpu_custom_call.1
$region0: #{tpu_custom_call.1}
  #allocation0 [shape = 'u32[]', space=smem, size = 0x4, offset = 0x4, fixed_abs, tag = 'smem constant byte address 0x4 - core index']
  #allocation1 [shape = 'u32[144,128]{1,0:T(1,128)}', space=vmem, size = 0x12000, scoped, tag = 'internal scratch']
  %s0 = inlined_call_operand.hbm [shape: f32[8,128], index: 0, kind: input, shape index: {}]
  %s1 = inlined_call_operand.hbm [shape: f32[8,128], index: 1, kind: output, shape index: {}]
  %s2 = sld [smem:[#allocation0]]
  $region18: #{tpu_custom_call.1} parent=0
    _
  %s4 = ssub.s32 1, %s2
  %s5 = scalar_select 0, %s4, %s2
  $region1: #{tpu_custom_call.1} parent=0
    #allocation2 [shape = 'u8[4096]{0}', space=vmem, size = 0x1000, scoped, tag = 'input window, operand 0, single buffered']
    #allocation3 [shape = 's32[1]{0}', space=sflag, size = 0x4, scoped, tag = 'scoped memory for tpu_custom_call.1']
    #allocation4 [shape = 's32[1]{0}', space=sflag, size = 0x4, scoped, tag = 'scoped memory for tpu_custom_call.1']
    #allocation5 [shape = 'u8[4096]{0}', space=vmem, size = 0x1000, scoped, tag = 'output window, operand 0, single buffered']
    %6 = vsyncpa [#allocation3], 0
    %7 = vsyncpa [#allocation4], 0
    // Predicated region
    $region2: #{tpu_custom_call.1} parent=1 // pred_check
      _
    $region3: #{tpu_custom_call.1} parent=1 // pred_check_branch
      %9 = sbr.rel (0) target = $region5
    $region4: #{tpu_custom_call.1} parent=1 // pred_region
      %s11 = ssub.s32 128, 128
      %12 = vsyncadd [#allocation3], %s11
      %s14 = sshll.u32 [#allocation2], 4
      %s15 = int_to_ptr.vmem [resolvable:$true] %s14
      %17 = dma.hbm_to_vmem [thread:$0]  %s0, 128, %s15, [#allocation3]
    $region5: #{tpu_custom_call.1} parent=1 // pred_fallthru
      _
    // Predicated region
    $region6: #{tpu_custom_call.1} parent=1 // pred_check
      _
    $region7: #{tpu_custom_call.1} parent=1 // pred_check_branch
      %19 = sbr.rel (0) target = $region9
    $region8: #{tpu_custom_call.1} parent=1 // pred_region
      %20 = dma.done [#allocation3], 128
    $region9: #{tpu_custom_call.1} parent=1 // pred_fallthru
      _
    %v21 = vld [vmem:[#allocation2] sm:$0xff]
    %22 = vrot.lane.b32.xlu0 %v21, 1
    %v23 = vpop.permute.xlu0 %22
    %24 = vst [vmem:[#allocation5] sm:$0xff] %v23
    // Predicated region
    $region10: #{tpu_custom_call.1} parent=1 // pred_check
      _
    $region11: #{tpu_custom_call.1} parent=1 // pred_check_branch
      %26 = sbr.rel (0) target = $region13
    $region12: #{tpu_custom_call.1} parent=1 // pred_region
      %s28 = ssub.s32 128, 128
      %29 = vsyncadd [#allocation4], %s28
      %s31 = sshll.u32 [#allocation5], 4
      %s32 = int_to_ptr.vmem [resolvable:$true] %s31
      %34 = dma.vmem_to_hbm [thread:$0]  %s32, 128, %s1, [#allocation4]
    $region13: #{tpu_custom_call.1} parent=1 // pred_fallthru
      _
    // Predicated region
    $region14: #{tpu_custom_call.1} parent=1 // pred_check
      _
    $region15: #{tpu_custom_call.1} parent=1 // pred_check_branch
      %36 = sbr.rel (0) target = $region17
    $region16: #{tpu_custom_call.1} parent=1 // pred_region
      %37 = dma.done [#allocation4], 128
    $region17: #{tpu_custom_call.1} parent=1 // pred_fallthru
      _
    %38 = vsyncpa [#allocation3], 1
    %39 = vsyncpa [#allocation4], 1

</llo_original>
